<compile_context>
chip_gen: v6e
topology: v6e:2x2x1
jax: 0.10.0
libtpu: 0.0.40
codegen_flags: <defaults>
</compile_context>

<pallas_src>
import math
import functools

import jax
import jax.numpy as jnp
from jax import lax
from jax.experimental import pallas as pl
from jax.experimental.pallas import tpu as pltpu


TM = 512          # M-tile (rows of B*S)
TK_CAP = 256      # K-tile cap
TN_CAP = 512      # N-tile cap (generic matmuls)


def _round_up(x, m):
    return (x + m - 1) // m * m


def _pick_tile(dim, cap):
    """Full dim if it fits under the cap, else the largest divisor-friendly tile."""
    if dim <= cap:
        return dim
    for c in (cap, 512, 384, 256, 128):
        if c <= cap and dim % c == 0:
            return c
    return cap  # will pad


# ------------------------------------------------------------------ weight prep (once)

def prep_linear(w, b, *, tk_cap=TK_CAP, tn_cap=TN_CAP):
    """Pre-cast weight to bf16 and pre-pad to tile multiples; pad bias."""
    K, N = w.shape
    tk = _pick_tile(K, tk_cap)
    tn = _pick_tile(N, tn_cap)
    Kp, Np = _round_up(K, tk), _round_up(N, tn)
    wp = jnp.pad(w, ((0, Kp - K), (0, Np - N))) if (Kp, Np) != (K, N) else w
    bp = jnp.pad(b, (0, Np - N)) if Np != N else b
    return {"w": wp.astype(jnp.bfloat16), "b": bp.astype(jnp.float32).reshape(1, Np),
            "K": K, "N": N, "tk": tk, "tn": tn}


# ------------------------------------------------------------------ tiled matmul (+bias, +ReLU)

def _matmul_bias_kernel(x_ref, w_ref, b_ref, o_ref, acc_ref, *, activation):
    k = pl.program_id(2)

    @pl.when(k == 0)
    def _():
        acc_ref[...] = jnp.zeros_like(acc_ref)

    # bf16 MXU inputs (cast hoisted out of the kernel), f32 accumulation.
    acc_ref[...] += jnp.dot(x_ref[...], w_ref[...],
                            preferred_element_type=jnp.float32)

    @pl.when(k == pl.num_programs(2) - 1)
    def _():
        acc = acc_ref[...] + b_ref[...]
        if activation == "relu":
            acc = jnp.maximum(acc, 0.0)
        o_ref[...] = acc.astype(o_ref.dtype)


def linear(x, wp, *, activation=None, out_dtype=jnp.bfloat16, tm=TM):
    """x:[M,K] (bf16) @ prepped weight; bias (+ReLU) fused in the epilogue."""
    M, K = x.shape
    N, tk, tn = wp["N"], wp["tk"], wp["tn"]
    Kp, Np = wp["w"].shape
    tm = min(tm, _round_up(M, 8))
    Mp = _round_up(M, tm)

    xb = x.astype(jnp.bfloat16)
    if (Mp, Kp) != (M, K):
        xb = jnp.pad(xb, ((0, Mp - M), (0, Kp - K)))

    kern = functools.partial(_matmul_bias_kernel, activation=activation)
    out = pl.pallas_call(
        kern,
        out_shape=jax.ShapeDtypeStruct((Mp, Np), out_dtype),
        grid=(Mp // tm, Np // tn, Kp // tk),
        in_specs=[pl.BlockSpec((tm, tk), lambda i, j, k: (i, k)),
                  pl.BlockSpec((tk, tn), lambda i, j, k: (k, j)),
                  pl.BlockSpec((1, tn), lambda i, j, k: (0, j))],
        out_specs=pl.BlockSpec((tm, tn), lambda i, j, k: (i, j)),
        scratch_shapes=[pltpu.VMEM((tm, tn), jnp.float32)],
        compiler_params=pltpu.CompilerParams(
            dimension_semantics=("parallel", "parallel", "arbitrary")),
    )(xb, wp["w"], wp["b"])

    if (Mp, Np) != (M, N):
        out = out[:M, :N]
    return out


# ------------------------------------------------------------------ matmul + bias + residual-add + LayerNorm (fused epilogue)

def _matmul_ln_kernel(x_ref, w_ref, b_ref, r_ref, g_ref, be_ref, o_ref, acc_ref, *, eps):
    k = pl.program_id(1)

    @pl.when(k == 0)
    def _():
        acc_ref[...] = jnp.zeros_like(acc_ref)

    acc_ref[...] += jnp.dot(x_ref[...], w_ref[...],
                            preferred_element_type=jnp.float32)

    @pl.when(k == pl.num_programs(1) - 1)
    def _():
        x = acc_ref[...] + b_ref[...] + r_ref[...].astype(jnp.float32)
        mu = jnp.mean(x, axis=-1, keepdims=True)
        var = jnp.mean(jnp.square(x - mu), axis=-1, keepdims=True)
        inv = lax.rsqrt(var + eps)
        o_ref[...] = ((x - mu) * inv * g_ref[...] + be_ref[...]).astype(o_ref.dtype)


def linear_add_ln(x, wp, res, gamma, beta, *, eps=1e-5, out_dtype=jnp.bfloat16, tm=TM):
    """(x @ w + b + res) -> LayerNorm, all fused; requires tn == N == D (no N padding)."""
    M, K = x.shape
    D, tk = wp["N"], wp["tk"]
    Kp = wp["w"].shape[0]
    assert wp["w"].shape[1] == D, "LN-fused matmul needs an un-padded N dimension"
    tm = min(tm, _round_up(M, 8))
    Mp = _round_up(M, tm)

    xb = x.astype(jnp.bfloat16)
    rb = res.astype(jnp.bfloat16)
    if (Mp, Kp) != (M, K):
        xb = jnp.pad(xb, ((0, Mp - M), (0, Kp - K)))
    if Mp != M:
        rb = jnp.pad(rb, ((0, Mp - M), (0, 0)))

    kern = functools.partial(_matmul_ln_kernel, eps=eps)
    out = pl.pallas_call(
        kern,
        out_shape=jax.ShapeDtypeStruct((Mp, D), out_dtype),
        grid=(Mp // tm, Kp // tk),
        in_specs=[pl.BlockSpec((tm, tk), lambda i, k: (i, k)),
                  pl.BlockSpec((tk, D), lambda i, k: (k, 0)),
                  pl.BlockSpec((1, D), lambda i, k: (0, 0)),
                  pl.BlockSpec((tm, D), lambda i, k: (i, 0)),
                  pl.BlockSpec((1, D), lambda i, k: (0, 0)),
                  pl.BlockSpec((1, D), lambda i, k: (0, 0))],
        out_specs=pl.BlockSpec((tm, D), lambda i, k: (i, 0)),
        scratch_shapes=[pltpu.VMEM((tm, D), jnp.float32)],
        compiler_params=pltpu.CompilerParams(
            dimension_semantics=("parallel", "arbitrary")),
    )(xb, wp["w"], wp["b"], rb, gamma.reshape(1, D), beta.reshape(1, D))

    return out[:M] if Mp != M else out


# ------------------------------------------------------------------ attention (fused QKV input, per-batch grid)

def _attention_kernel(qkv_ref, o_ref, *, n_heads, scale):
    # qkv_ref block: (1, S, 3D) bf16; o_ref block: (1, S, D) bf16.
    # Heads sliced with static offsets; outputs concatenated for ONE lane-dense
    # full-D store (avoids masked 64-lane partial stores).
    D = o_ref.shape[2]
    dh = D // n_heads
    outs = []
    for h in range(n_heads):
        lo = h * dh
        q = qkv_ref[0, :, lo:lo + dh] * scale                    # scale folded into q
        k = qkv_ref[0, :, D + lo:D + lo + dh]
        v = qkv_ref[0, :, 2 * D + lo:2 * D + lo + dh]
        # scores = q @ k^T (contract last dims, no explicit transpose), f32.
        s = lax.dot_general(q, k, (((1,), (1,)), ((), ())),
                            preferred_element_type=jnp.float32)
        # TODO(synk): no padding/attention mask here (none in the reference forward).
        m = jnp.max(s, axis=-1, keepdims=True)
        p = jnp.exp(s - m)
        p = p * pl.reciprocal(jnp.sum(p, axis=-1, keepdims=True), approx=True)
        outs.append(jnp.dot(p.astype(jnp.bfloat16), v,
                            preferred_element_type=jnp.float32))
    o_ref[0] = jnp.concatenate(outs, axis=-1).astype(o_ref.dtype)


def multihead_attention(qkv, *, n_heads, out_dtype=jnp.bfloat16):
    """qkv: [B, S, 3D] bf16 (fused Q|K|V) -> [B, S, D] bf16 attention output."""
    B, S, D3 = qkv.shape
    D = D3 // 3
    scale = 1.0 / math.sqrt(D // n_heads)
    kern = functools.partial(_attention_kernel, n_heads=n_heads, scale=scale)
    # TODO(synk): for B == 1 on v7x (2 TCs) add a head-group grid axis so both cores work.
    return pl.pallas_call(
        kern,
        out_shape=jax.ShapeDtypeStruct((B, S, D), out_dtype),
        grid=(B,),
        in_specs=[pl.BlockSpec((1, S, D3), lambda b: (b, 0, 0))],
        out_specs=pl.BlockSpec((1, S, D), lambda b: (b, 0, 0)),
        compiler_params=pltpu.CompilerParams(dimension_semantics=("parallel",)),
    )(qkv.astype(jnp.bfloat16))


# ------------------------------------------------------------------ embedding sum (word + pos + segment)

def _embed_sum_kernel(w_ref, s_ref, p_ref, o_ref):
    # pos is a [S, D] table fed directly (no [B,S,D] broadcast slab in HBM).
    o_ref[...] = (w_ref[...] + s_ref[...] + p_ref[...][None]).astype(o_ref.dtype)


def embed_sum(we, se, pos, *, out_dtype=jnp.bfloat16):
    B, S, D = we.shape
    return pl.pallas_call(
        _embed_sum_kernel,
        out_shape=jax.ShapeDtypeStruct((B, S, D), out_dtype),
        grid=(B,),
        in_specs=[pl.BlockSpec((1, S, D), lambda b: (b, 0, 0)),
                  pl.BlockSpec((1, S, D), lambda b: (b, 0, 0)),
                  pl.BlockSpec((S, D), lambda b: (0, 0))],
        out_specs=pl.BlockSpec((1, S, D), lambda b: (b, 0, 0)),
        compiler_params=pltpu.CompilerParams(dimension_semantics=("parallel",)),
    )(we, se, pos)


# ------------------------------------------------------------------ params

def sinusoidal_pos(max_seq_len, embedding_dim):
    """Matches BERTEmbeddingBlock: pos_units[i] = 10000**(2*i/d)."""
    pair = jnp.arange(embedding_dim // 2, dtype=jnp.float32)
    units = jnp.power(10000.0, 2.0 * pair / float(embedding_dim))   # [d/2]
    p = jnp.arange(max_seq_len, dtype=jnp.float32)[:, None]          # [S,1]
    ang = p / units[None, :]                                         # [S, d/2]
    pos = jnp.zeros((max_seq_len, embedding_dim), jnp.float32)
    pos = pos.at[:, 0::2].set(jnp.sin(ang))
    pos = pos.at[:, 1::2].set(jnp.cos(ang))
    return pos


def init_params(key, *, vocab, d_model, n_heads, hidden, n_blocks, n_enc_layers,
                max_seq_len):
    def nrm(k, shape, scale=0.02):
        return scale * jax.random.normal(k, shape, jnp.float32)

    keys = jax.random.split(key, 4 + n_blocks)
    params = {
        "word_emb": nrm(keys[0], (vocab, d_model)),
        "seg_emb": nrm(keys[1], (3, d_model)),
        "pos": sinusoidal_pos(max_seq_len, d_model),
        # vocab-projection head: weight pre-cast/padded once (bf16).
        "lin": prep_linear(nrm(keys[2], (d_model, vocab)), jnp.zeros((vocab,), jnp.float32)),
        "blocks": [],
    }
    for b in range(n_blocks):
        bkey = keys[4 + b]
        layers = []
        lkeys = jax.random.split(bkey, n_enc_layers)
        for l in range(n_enc_layers):
            ks = jax.random.split(lkeys[l], 6)
            wq = nrm(ks[0], (d_model, d_model))
            wk = nrm(ks[1], (d_model, d_model))
            wv = nrm(ks[2], (d_model, d_model))
            layers.append({
                # fused QKV projection weight/bias ([D, 3D] / [3D]), prepped bf16.
                "qkv": prep_linear(jnp.concatenate([wq, wk, wv], axis=1),
                                   jnp.zeros((3 * d_model,), jnp.float32)),
                # wo / w2 feed the LN-fused matmul: keep N = D un-padded.
                "wo": prep_linear(nrm(ks[3], (d_model, d_model)),
                                  jnp.zeros((d_model,), jnp.float32), tn_cap=d_model),
                "w1": prep_linear(nrm(ks[4], (d_model, hidden)),
                                  jnp.zeros((hidden,), jnp.float32)),
                "w2": prep_linear(nrm(ks[5], (hidden, d_model)),
                                  jnp.zeros((d_model,), jnp.float32), tn_cap=d_model),
                "ln1_g": jnp.ones((d_model,), jnp.float32),
                "ln1_b": jnp.zeros((d_model,), jnp.float32),
                "ln2_g": jnp.ones((d_model,), jnp.float32),
                "ln2_b": jnp.zeros((d_model,), jnp.float32),
            })
        params["blocks"].append(layers)
    return params


# ------------------------------------------------------------------ forward

def bert_forward(params, x_ids, segment_info, *, n_heads):
    B, S = x_ids.shape
    D = params["word_emb"].shape[1]

    # BERTEmbeddingBlock: word + positional + segment embeddings.
    # (embedding gathers stay in XLA; the 3-way sum is a Pallas kernel, bf16 out.)
    we = jnp.take(params["word_emb"], x_ids, axis=0)            # [B,S,D]
    se = jnp.take(params["seg_emb"], segment_info, axis=0)      # [B,S,D]
    h = embed_sum(we, se, params["pos"][:S]).reshape(B * S, D)  # bf16 [M,D]

    for block in params["blocks"]:
        for layer in block:
            # --- multi-head self attention (fused QKV projection, bf16 slabs) ---
            qkv = linear(h, layer["qkv"])                                   # bf16 [M,3D]
            attn = multihead_attention(qkv.reshape(B, S, 3 * D), n_heads=n_heads)
            attn = attn.reshape(B * S, D)                                   # bf16
            # wo matmul + residual add + LayerNorm fused in one kernel.
            h = linear_add_ln(attn, layer["wo"], h, layer["ln1_g"], layer["ln1_b"])
            # --- position-wise feed-forward ---
            ff = linear(h, layer["w1"], activation="relu")                  # bf16
            h = linear_add_ln(ff, layer["w2"], h, layer["ln2_g"], layer["ln2_b"])

    logits = linear(h, params["lin"], out_dtype=jnp.float32)                # [M, V] f32
    return logits.reshape(B, S, -1)


# ------------------------------------------------------------------ main

if __name__ == "__main__":
    # Small synthetic config (consistent with the module's constructor knobs).
    VOCAB = 64            # num_embeddings
    D_MODEL = 32          # embedding_dim
    N_HEADS = 4           # num_attention
    HIDDEN = 32           # hidden_channel
    N_BLOCKS = 2          # num_transformer_block
    N_ENC_LAYERS = 1      # num_enc_layers
    MAX_SEQ = 64
    B, S = 2, 8

    key = jax.random.PRNGKey(0)
    kp, kx, ks = jax.random.split(key, 3)

    params = init_params(kp, vocab=VOCAB, d_model=D_MODEL, n_heads=N_HEADS,
                         hidden=HIDDEN, n_blocks=N_BLOCKS,
                         n_enc_layers=N_ENC_LAYERS, max_seq_len=MAX_SEQ)

    x_ids = jax.random.randint(kx, (B, S), 0, VOCAB, dtype=jnp.int32)
    segment_info = jax.random.randint(ks, (B, S), 0, 3, dtype=jnp.int32)

    out = bert_forward(params, x_ids, segment_info, n_heads=N_HEADS)
    out = jax.block_until_ready(out)

    assert out.shape == (B, S, VOCAB), out.shape
    assert out.dtype == jnp.float32
    assert bool(jnp.all(jnp.isfinite(out)))
    print("KERNEL_OK")
</pallas_src>

<mosaic_0001>
module attributes {stable_mosaic.version = 11 : i64} {
  func.func @_embed_sum_kernel(%arg0: i32, %arg1: memref<1x8x32xf32, #tpu.memory_space<vmem>>, %arg2: memref<1x8x32xf32, #tpu.memory_space<vmem>>, %arg3: memref<8x32xf32, #tpu.memory_space<vmem>>, %arg4: memref<1x8x32xbf16, #tpu.memory_space<vmem>>) attributes {dimension_semantics = [#tpu.dimension_semantics<parallel>], iteration_bounds = array<i64: 2>, scalar_prefetch = 0 : i64, scratch_operands = 0 : i64, tpu.core_type = #tpu.core_type<tc>, window_params = [{transform_indices = @transform_0, window_bounds = array<i64: 1, 8, 32>}, {transform_indices = @transform_1, window_bounds = array<i64: 1, 8, 32>}, {pipeline_mode = #tpu.pipeline_mode<synchronous>, transform_indices = @transform_2, window_bounds = array<i64: 8, 32>}, {transform_indices = @transform_3, window_bounds = array<i64: 1, 8, 32>}]} {
    %c0 = arith.constant 0 : index
    %c0_0 = arith.constant 0 : index
    %c0_1 = arith.constant 0 : index
    %0 = vector.load %arg1[%c0, %c0_0, %c0_1] : memref<1x8x32xf32, #tpu.memory_space<vmem>>, vector<1x8x32xf32>
    %c0_2 = arith.constant 0 : index
    %c0_3 = arith.constant 0 : index
    %c0_4 = arith.constant 0 : index
    %1 = vector.load %arg2[%c0_2, %c0_3, %c0_4] : memref<1x8x32xf32, #tpu.memory_space<vmem>>, vector<1x8x32xf32>
    %2 = arith.addf %0, %1 : vector<1x8x32xf32>
    %c0_5 = arith.constant 0 : index
    %c0_6 = arith.constant 0 : index
    %3 = vector.load %arg3[%c0_5, %c0_6] : memref<8x32xf32, #tpu.memory_space<vmem>>, vector<8x32xf32>
    %4 = vector.shape_cast %3 : vector<8x32xf32> to vector<1x8x32xf32>
    %5 = arith.addf %2, %4 : vector<1x8x32xf32>
    %6 = arith.truncf %5 : vector<1x8x32xf32> to vector<1x8x32xbf16>
    %c0_7 = arith.constant 0 : index
    %c0_8 = arith.constant 0 : index
    %c0_9 = arith.constant 0 : index
    %7 = vector.load %arg4[%c0_7, %c0_8, %c0_9] : memref<1x8x32xbf16, #tpu.memory_space<vmem>>, vector<1x8x32xbf16>
    tpu.vector_store %arg4[%c0_7, %c0_8, %c0_9], %6 {strides = array<i32>} : memref<1x8x32xbf16, #tpu.memory_space<vmem>>, vector<1x8x32xbf16>,
    return
  }
  func.func @transform_0(%arg0: i32) -> (i32, i32, i32) {
    %c0_i32 = arith.constant 0 : i32
    %c0_i32_0 = arith.constant 0 : i32
    %c0_i32_1 = arith.constant 0 : i32
    return %arg0, %c0_i32, %c0_i32_0 : i32, i32, i32
  }
  func.func @transform_1(%arg0: i32) -> (i32, i32, i32) {
    %c0_i32 = arith.constant 0 : i32
    %c0_i32_0 = arith.constant 0 : i32
    %c0_i32_1 = arith.constant 0 : i32
    return %arg0, %c0_i32, %c0_i32_0 : i32, i32, i32
  }
  func.func @transform_2(%arg0: i32) -> (i32, i32) {
    %c0_i32 = arith.constant 0 : i32
    %c0_i32_0 = arith.constant 0 : i32
    %c0_i32_1 = arith.constant 0 : i32
    return %c0_i32, %c0_i32_0 : i32, i32
  }
  func.func @transform_3(%arg0: i32) -> (i32, i32, i32) {
    %c0_i32 = arith.constant 0 : i32
    %c0_i32_0 = arith.constant 0 : i32
    %c0_i32_1 = arith.constant 0 : i32
    return %arg0, %c0_i32, %c0_i32_0 : i32, i32, i32
  }
}

</mosaic_0001>

<llo_original>
// kernel: tpu_custom_call.1
$region0: #{tpu_custom_call.1}
  #allocation0 [shape = 'u32[]', space=smem, size = 0x4, offset = 0x4, fixed_abs, tag = 'smem constant byte address 0x4 - core index']
  #allocation1 [shape = 'u32[144,128]{1,0:T(1,128)}', space=vmem, size = 0x12000, scoped, tag = 'internal scratch']
  %s0 = inlined_call_operand.hbm [shape: f32[2,8,32], index: 0, kind: input, shape index: {}]
  %s1 = inlined_call_operand.hbm [shape: f32[2,8,32], index: 1, kind: input, shape index: {}]
  %s2 = inlined_call_operand.hbm [shape: f32[8,32], index: 2, kind: input, shape index: {}]
  %s3 = inlined_call_operand.hbm [shape: bf16[2,8,32], index: 3, kind: output, shape index: {}]
  %s4 = sld [smem:[#allocation0]]
  $region57: #{tpu_custom_call.1} parent=0
    _
  %s6 = ssub.s32 1, %s4
  %s7 = scalar_select 0, %s6, %s4
  $region1: #{tpu_custom_call.1} parent=0
    #allocation2 [shape = 'u8[8192]{0}', space=vmem, size = 0x2000, scoped, tag = 'input window, operand 0']
    #allocation3 [shape = 's32[2]{0}', space=sflag, size = 0x8, scoped, tag = 'scoped memory for tpu_custom_call.1']
    #allocation4 [shape = 's32[2]{0}', space=sflag, size = 0x8, scoped, tag = 'scoped memory for tpu_custom_call.1']
    #allocation5 [shape = 'u8[8192]{0}', space=vmem, size = 0x2000, scoped, tag = 'input window, operand 1']
    #allocation6 [shape = 's32[2]{0}', space=sflag, size = 0x8, scoped, tag = 'scoped memory for tpu_custom_call.1']
    #allocation7 [shape = 'u8[4096]{0}', space=vmem, size = 0x1000, scoped, tag = 'input window, operand 2, single buffered']
    #allocation8 [shape = 'u8[4096]{0}', space=vmem, size = 0x1000, scoped, tag = 'output window, operand 0']
    %8 = vsyncpa [#allocation3], 0
    %s9 = scalar_lea.sflag [#allocation3], 1
    %10 = vsyncpa %s9, 0
    %11 = vsyncpa [#allocation6], 0
    %s12 = scalar_lea.sflag [#allocation6], 1
    %13 = vsyncpa %s12, 0
    %14 = vsyncpa [#allocation4], 0
    %s15 = scalar_lea.sflag [#allocation4], 1
    %16 = vsyncpa %s15, 0
    loop: start=0, step=1, limit=4
    $region2: #{tpu_custom_call.1} parent=1 // loop_pre_header
      _
    $region3: #{tpu_custom_call.1} parent=1 // loop_header
      %s18 = sphi 0, %s22
      %p19 = scmp.ge.s32.totalorder %s18, 4
      %s28 = sphi 0, %s30
      %s31 = sphi 0, %s28
      %s32 = sphi 0, %s31
      %s48 = sphi 0, %s32
      %s54 = sphi 0, %s56
      %s57 = sphi 0, %s54
      %s58 = sphi 0, %s57
      %s74 = sphi 0, %s58
      %s78 = sphi 0, %s78
      %s80 = sphi 0, %s78
      %s81 = sphi 0, %s80
      %s95 = sphi 0, %s81
      %s101 = sphi 0, %s103
      %s104 = sphi 0, %s101
      %s105 = sphi 0, %s104
      %s121 = sphi 0, %s105
    $region4: #{tpu_custom_call.1} parent=1 // loop_header_branch
      %21 = sbr.rel (%p19) target = $region8
    $region5: #{tpu_custom_call.1} parent=1 // loop_body
      %s23 = ssub.s32 %s18, 1
      %s24 = ssub.s32 %s18, 2
      %s25 = sadd.s32 %s18, 1
      %s26 = ssub.s32 %s18, %s25
      %p27 = scmp.eq.s32.totalorder %s26, 0
      %s29 = sadd.s32 %s28, 1
      %s30 = scalar_select %p27, %s28, %s29
      %p33 = pneg %p27
      %p34 = scmp.eq.s32.totalorder %s18, 1
      %p35 = por %p33, %p34
      %p36 = scmp.ne.s32.totalorder %s28, %s31
      %p37 = scmp.eq.s32.totalorder %s18, 0
      %p38 = por %p36, %p37
      %p39 = scmp.ne.s32.totalorder %s28, %s31
      %p40 = scmp.eq.s32.totalorder %s23, 1
      %p41 = por %p39, %p40
      %p42 = scmp.ne.s32.totalorder %s31, %s32
      %p43 = scmp.eq.s32.totalorder %s23, 0
      %p44 = por %p42, %p43
      %p45 = scmp.ne.s32.totalorder %s31, %s32
      %p46 = scmp.eq.s32.totalorder %s24, 1
      %p47 = por %p45, %p46
      %p49 = scmp.ne.s32.totalorder %s32, %s48
      %p50 = scmp.eq.s32.totalorder %s24, 0
      %p51 = por %p49, %p50
      %s52 = ssub.s32 %s18, %s25
      %p53 = scmp.eq.s32.totalorder %s52, 0
      %s55 = sadd.s32 %s54, 1
      %s56 = scalar_select %p53, %s54, %s55
      %p59 = pneg %p53
      %p60 = scmp.eq.s32.totalorder %s18, 1
      %p61 = por %p59, %p60
      %p62 = scmp.ne.s32.totalorder %s54, %s57
      %p63 = scmp.eq.s32.totalorder %s18, 0
      %p64 = por %p62, %p63
      %p65 = scmp.ne.s32.totalorder %s54, %s57
      %p66 = scmp.eq.s32.totalorder %s23, 1
      %p67 = por %p65, %p66
      %p68 = scmp.ne.s32.totalorder %s57, %s58
      %p69 = scmp.eq.s32.totalorder %s23, 0
      %p70 = por %p68, %p69
      %p71 = scmp.ne.s32.totalorder %s57, %s58
      %p72 = scmp.eq.s32.totalorder %s24, 1
      %p73 = por %p71, %p72
      %p75 = scmp.ne.s32.totalorder %s58, %s74
      %p76 = scmp.eq.s32.totalorder %s24, 0
      %p77 = por %p75, %p76
      %s79 = sadd.s32 %s78, 1
      %p82 = scmp.eq.s32.totalorder %s18, 1
      %p83 = scmp.ne.s32.totalorder %s78, %s80
      %p84 = scmp.eq.s32.totalorder %s18, 0
      %p85 = por %p83, %p84
      %p86 = scmp.ne.s32.totalorder %s78, %s80
      %p87 = scmp.eq.s32.totalorder %s23, 1
      %p88 = por %p86, %p87
      %p89 = scmp.ne.s32.totalorder %s80, %s81
      %p90 = scmp.eq.s32.totalorder %s23, 0
      %p91 = por %p89, %p90
      %p92 = scmp.ne.s32.totalorder %s80, %s81
      %p93 = scmp.eq.s32.totalorder %s24, 1
      %p94 = por %p92, %p93
      %p96 = scmp.ne.s32.totalorder %s81, %s95
      %p97 = scmp.eq.s32.totalorder %s24, 0
      %p98 = por %p96, %p97
      %s99 = ssub.s32 %s18, %s25
      %p100 = scmp.eq.s32.totalorder %s99, 0
      %s102 = sadd.s32 %s101, 1
      %s103 = scalar_select %p100, %s101, %s102
      %p106 = pneg %p100
      %p107 = scmp.eq.s32.totalorder %s18, 1
      %p108 = por %p106, %p107
      %p109 = scmp.ne.s32.totalorder %s101, %s104
      %p110 = scmp.eq.s32.totalorder %s18, 0
      %p111 = por %p109, %p110
      %p112 = scmp.ne.s32.totalorder %s101, %s104
      %p113 = scmp.eq.s32.totalorder %s23, 1
      %p114 = por %p112, %p113
      %p115 = scmp.ne.s32.totalorder %s104, %s105
      %p116 = scmp.eq.s32.totalorder %s23, 0
      %p117 = por %p115, %p116
      %p118 = scmp.ne.s32.totalorder %s104, %s105
      %p119 = scmp.eq.s32.totalorder %s24, 1
      %p120 = por %p118, %p119
      %p122 = scmp.ne.s32.totalorder %s105, %s121
      %p123 = scmp.eq.s32.totalorder %s24, 0
      %p124 = por %p122, %p123
      %p125 = scmp.le.s32.totalorder 1, %s18
      %p126 = scmp.lt.s32.totalorder %s18, 3
      %p127 = pnand %p125, %p126
      %p128 = pneg %p127
      // Predicated region
      $region9: #{tpu_custom_call.1} parent=5 // pred_check
        _
      $region10: #{tpu_custom_call.1} parent=5 // pred_check_branch
        %130 = sbr.rel (%p127) target = $region12
      $region11: #{tpu_custom_call.1} parent=5 // pred_region
        %s131 = ssub.s32 %s18, 1
        // Predicated region
        $region13: #{tpu_custom_call.1} parent=11 // pred_check
          %p132 = pneg %p91
        $region14: #{tpu_custom_call.1} parent=11 // pred_check_branch
          %134 = sbr.rel (%p132) target = $region16
        $region15: #{tpu_custom_call.1} parent=11 // pred_region
          %s136 = ssub.s32 128, 128
          %137 = vsyncadd [#allocation6], %s136
          %s139 = sshll.u32 [#allocation7], 4
          %s140 = int_to_ptr.vmem [resolvable:$true] %s139
          %142 = dma.hbm_to_vmem [thread:$0]  %s2, 128, %s140, [#allocation6]
        $region16: #{tpu_custom_call.1} parent=11 // pred_fallthru
          _
      $region12: #{tpu_custom_call.1} parent=5 // pred_fallthru
        _
      %p143 = scmp.lt.s32.totalorder %s18, 2
      // Predicated region
      $region17: #{tpu_custom_call.1} parent=5 // pred_check
        %p144 = pneg %p143
      $region18: #{tpu_custom_call.1} parent=5 // pred_check_branch
        %146 = sbr.rel (%p144) target = $region20
      $region19: #{tpu_custom_call.1} parent=5 // pred_region
        // Predicated region
        $region21: #{tpu_custom_call.1} parent=19 // pred_check
          %p147 = pneg %p38
        $region22: #{tpu_custom_call.1} parent=19 // pred_check_branch
          %149 = sbr.rel (%p147) target = $region24
        $region23: #{tpu_custom_call.1} parent=19 // pred_region
          %s150 = sand.u32 %s28, 1
          %s151 = scalar_lea.sflag [#allocation3], %s150
          %s152 = sand.u32 %s28, 1
          %s153 = smul.addr %s152, 8
          %s154 = scalar_lea.vmem [#allocation2], %s153
          %s156 = ssub.s32 128, 128
          %157 = vsyncadd %s151, %s156
          %s158 = smul.addr %s18, 128
          %s159 = scalar_lea.hbm %s0, %s158
          %s161 = sshll.u32 %s154, 4
          %s162 = int_to_ptr.vmem [resolvable:$true] %s161
          %164 = dma.hbm_to_vmem [thread:$0]  %s159, 128, %s162, %s151
        $region24: #{tpu_custom_call.1} parent=19 // pred_fallthru
          _
        // Predicated region
        $region25: #{tpu_custom_call.1} parent=19 // pred_check
          %p165 = pneg %p64
        $region26: #{tpu_custom_call.1} parent=19 // pred_check_branch
          %167 = sbr.rel (%p165) target = $region28
        $region27: #{tpu_custom_call.1} parent=19 // pred_region
          %s168 = sand.u32 %s18, 1
          %s169 = scalar_lea.sflag [#allocation6], %s168
          %s170 = sand.u32 %s54, 1
          %s171 = smul.addr %s170, 8
          %s172 = scalar_lea.vmem [#allocation5], %s171
          %s174 = ssub.s32 128, 128
          %175 = vsyncadd %s169, %s174
          %s176 = smul.addr %s18, 128
          %s177 = scalar_lea.hbm %s1, %s176
          %s179 = sshll.u32 %s172, 4
          %s180 = int_to_ptr.vmem [resolvable:$true] %s179
          %182 = dma.hbm_to_vmem [thread:$0]  %s177, 128, %s180, %s169
        $region28: #{tpu_custom_call.1} parent=19 // pred_fallthru
          _
      $region20: #{tpu_custom_call.1} parent=5 // pred_fallthru
        _
      %p183 = scmp.le.s32.totalorder 1, %s18
      %p184 = scmp.lt.s32.totalorder %s18, 3
      %p185 = pnand %p183, %p184
      %p186 = pneg %p185
      // Predicated region
      $region29: #{tpu_custom_call.1} parent=5 // pred_check
        _
      $region30: #{tpu_custom_call.1} parent=5 // pred_check_branch
        %188 = sbr.rel (%p185) target = $region32
      $region31: #{tpu_custom_call.1} parent=5 // pred_region
        %s189 = ssub.s32 %s18, 1
        %s190 = sand.u32 %s31, 1
        %s191 = scalar_lea.sflag [#allocation3], %s190
        %s192 = sand.u32 %s31, 1
        %s193 = smul.addr %s192, 8
        %s194 = scalar_lea.vmem [#allocation2], %s193
        // Predicated region
        $region33: #{tpu_custom_call.1} parent=31 // pred_check
          %p195 = pneg %p44
        $region34: #{tpu_custom_call.1} parent=31 // pred_check_branch
          %197 = sbr.rel (%p195) target = $region36
        $region35: #{tpu_custom_call.1} parent=31 // pred_region
          %198 = dma.done %s191, 128
        $region36: #{tpu_custom_call.1} parent=31 // pred_fallthru
          _
        %s199 = sand.u32 %s23, 1
        %s200 = scalar_lea.sflag [#allocation6], %s199
        %s201 = sand.u32 %s57, 1
        %s202 = smul.addr %s201, 8
        %s203 = scalar_lea.vmem [#allocation5], %s202
        // Predicated region
        $region37: #{tpu_custom_call.1} parent=31 // pred_check
          %p204 = pneg %p70
        $region38: #{tpu_custom_call.1} parent=31 // pred_check_branch
          %206 = sbr.rel (%p204) target = $region40
        $region39: #{tpu_custom_call.1} parent=31 // pred_region
          %207 = dma.done %s200, 128
        $region40: #{tpu_custom_call.1} parent=31 // pred_fallthru
          _
        // Predicated region
        $region41: #{tpu_custom_call.1} parent=31 // pred_check
          %p208 = pneg %p91
        $region42: #{tpu_custom_call.1} parent=31 // pred_check_branch
          %210 = sbr.rel (%p208) target = $region44
        $region43: #{tpu_custom_call.1} parent=31 // pred_region
          %211 = dma.done [#allocation6], 128
        $region44: #{tpu_custom_call.1} parent=31 // pred_fallthru
          _
        %s212 = sand.u32 %s31, 1
        %s213 = scalar_lea.sflag [#allocation3], %s212
        %s214 = sand.u32 %s31, 1
        %s215 = smul.addr %s214, 8
        %s216 = scalar_lea.vmem [#allocation2], %s215
        %p217 = pneg %p44
        %p218 = pneg %p41
        %s219 = sand.u32 %s23, 1
        %s220 = scalar_lea.sflag [#allocation6], %s219
        %s221 = sand.u32 %s57, 1
        %s222 = smul.addr %s221, 8
        %s223 = scalar_lea.vmem [#allocation5], %s222
        %p224 = pneg %p70
        %p225 = pneg %p67
        %p226 = pneg %p91
        %p227 = pneg %p88
        %p228 = pneg %p117
        %p229 = pneg %p114
        %s230 = sand.u32 %s104, 1
        %s231 = scalar_lea.sflag [#allocation4], %s230
        %s232 = sand.u32 %s104, 1
        %s233 = smul.addr %s232, 4
        %s234 = scalar_lea.vmem [#allocation8], %s233
        %v235 = vld [vmem:[%s194] sm:$0xff]
        %v236 = vld [vmem:[%s203] sm:$0xff]
        %v237 = vadd.f32 %v235, %v236
        %v238 = vld [vmem:[#allocation7] sm:$0xff]
        %v239 = vadd.f32 %v237, %v238
        %v240 = vpack.c.bf16 %v239, %v239
        %vm241 = vcmask 257024
        %242 = vst.msk [vmem:[%s234] sm:$0xf] %vm241, %v240
        %s243 = sand.u32 %s104, 1
        %s244 = scalar_lea.sflag [#allocation4], %s243
        %s245 = sand.u32 %s104, 1
        %s246 = smul.addr %s245, 4
        %s247 = scalar_lea.vmem [#allocation8], %s246
        // Predicated region
        $region45: #{tpu_custom_call.1} parent=31 // pred_check
          %p248 = pneg %p114
        $region46: #{tpu_custom_call.1} parent=31 // pred_check_branch
          %250 = sbr.rel (%p248) target = $region48
        $region47: #{tpu_custom_call.1} parent=31 // pred_region
          %s252 = ssub.s32 64, 64
          %253 = vsyncadd %s244, %s252
          %s254 = smul.addr %s23, 64
          %s255 = scalar_lea.hbm %s3, %s254
          %s257 = sshll.u32 %s247, 4
          %s258 = int_to_ptr.vmem [resolvable:$true] %s257
          %260 = dma.vmem_to_hbm [thread:$0]  %s258, 64, %s255, %s244
        $region48: #{tpu_custom_call.1} parent=31 // pred_fallthru
          _
      $region32: #{tpu_custom_call.1} parent=5 // pred_fallthru
        _
      %p261 = scmp.le.s32.totalorder 2, %s18
      // Predicated region
      $region49: #{tpu_custom_call.1} parent=5 // pred_check
        %p262 = pneg %p261
      $region50: #{tpu_custom_call.1} parent=5 // pred_check_branch
        %264 = sbr.rel (%p262) target = $region52
      $region51: #{tpu_custom_call.1} parent=5 // pred_region
        %s265 = ssub.s32 %s18, 2
        // Predicated region
        $region53: #{tpu_custom_call.1} parent=51 // pred_check
          %p266 = pneg %p120
        $region54: #{tpu_custom_call.1} parent=51 // pred_check_branch
          %268 = sbr.rel (%p266) target = $region56
        $region55: #{tpu_custom_call.1} parent=51 // pred_region
          %s269 = sand.u32 %s105, 1
          %s270 = scalar_lea.sflag [#allocation4], %s269
          %s271 = sand.u32 %s105, 1
          %s272 = smul.addr %s271, 4
          %s273 = scalar_lea.vmem [#allocation8], %s272
          %274 = dma.done %s270, 64
        $region56: #{tpu_custom_call.1} parent=51 // pred_fallthru
          _
      $region52: #{tpu_custom_call.1} parent=5 // pred_fallthru
        _
    $region6: #{tpu_custom_call.1} parent=1 // loop_footer
      %s22 = sadd.s32 1, %s18
    $region7: #{tpu_custom_call.1} parent=1 // loop_footer_branch
      %17 = sbr.rel target = $region3
    $region8: #{tpu_custom_call.1} parent=1 // loop_exit
      _
    %275 = vsyncpa [#allocation3], 1
    %s276 = scalar_lea.sflag [#allocation3], 1
    %277 = vsyncpa %s276, 1
    %278 = vsyncpa [#allocation6], 1
    %s279 = scalar_lea.sflag [#allocation6], 1
    %280 = vsyncpa %s279, 1
    %281 = vsyncpa [#allocation4], 1
    %s282 = scalar_lea.sflag [#allocation4], 1
    %283 = vsyncpa %s282, 1

</llo_original>
